<compile_context>
chip_gen: v7x
topology: tpu7x:2x2x1
jax: 0.10.0
libtpu: 0.0.40
codegen_flags: <defaults>
</compile_context>

<pallas_src>
import functools

import jax
import jax.numpy as jnp
from jax.experimental import pallas as pl
from jax.experimental.pallas import tpu as pltpu


def _row_fold(x, acc_r):
    """Sum a (tile_r, 128) slab into (acc_r, 128) with vreg-aligned slices.

    acc_r is either 8 (tile_r a multiple of 8 -> slices land exactly on vreg
    sublane boundaries, pure VPU adds) or tile_r itself (identity).
    """
    tr = x.shape[0]
    if tr == acc_r:
        return x
    acc = x[0:acc_r, :]
    for j in range(1, tr // acc_r):
        acc = acc + x[j * acc_r:(j + 1) * acc_r, :]
    return acc


def _dice_sums_kernel(logits_ref, targets_ref, inter_ref, union_ref, *,
                      num_classes, ignore_index, hw_valid, tile_r, acc_r,
                      need_pad_mask):
    # logits_ref : (C, tile_r, 128) VMEM tile (f32 or bf16; cast in-kernel)
    # targets_ref: (1, tile_r, 128) int32 VMEM tile
    # inter_ref / union_ref: (C, acc_r, 128) f32 accumulators, one block per
    #   batch element, revisited across the pixel-tile (arbitrary) axis.
    i = pl.program_id(1)

    @pl.when(i == 0)
    def _():
        inter_ref[...] = jnp.zeros_like(inter_ref)
        union_ref[...] = jnp.zeros_like(union_ref)

    C = num_classes
    t = targets_ref[0]                                     # (tile_r, 128)

    # Per-class slabs in f32 (bf16 -> f32 extend happens here, after DMA).
    xs = [logits_ref[c].astype(jnp.float32) for c in range(C)]

    mask = None
    if need_pad_mask:
        # Global pixel index of every element of this tile.
        row = jax.lax.broadcasted_iota(jnp.int32, (tile_r, 128), 0)
        lane = jax.lax.broadcasted_iota(jnp.int32, (tile_r, 128), 1)
        pix = (i * tile_r + row) * 128 + lane
        valid = pix < hw_valid
        # Zero the logits of padded / out-of-range pixels BEFORE exp so that
        # undefined DMA padding can never produce Inf/NaN that would survive
        # the later multiply-by-zero mask.
        xs = [jnp.where(valid, x, 0.0) for x in xs]
        mask = valid
    if ignore_index is not None:
        keep = t != ignore_index
        mask = keep if mask is None else jnp.logical_and(mask, keep)

    # Softmax over classes: elementwise max/add across the C slabs (VPU only).
    m = xs[0]
    for c in range(1, C):
        m = jnp.maximum(m, xs[c])
    es = [jnp.exp(x - m) for x in xs]                      # EUP
    denom = es[0]
    for c in range(1, C):
        denom = denom + es[c]
    rinv = pl.reciprocal(denom, approx=True)               # EUP vrcp (free slot)

    fmask = mask.astype(jnp.float32) if mask is not None else None
    for c in range(C):
        p = es[c] * rinv                                   # (tile_r, 128)
        oh = (t == c).astype(jnp.float32)
        if fmask is not None:
            p = p * fmask
            oh = oh * fmask
        inter_ref[c] += _row_fold(p * oh, acc_r)
        union_ref[c] += _row_fold(p + oh, acc_r)


def dice_loss(logits_nchw, targets_nhw, *, smooth=1.0, ignore_index=None):
    """Pallas implementation of DiceLoss.forward (PyTorch semantics)."""
    N, C, H, W = logits_nchw.shape
    HW = H * W
    hw_pad = ((HW + 127) // 128) * 128
    R = hw_pad // 128                                      # rows of 128 pixels

    # Free reshape; bf16 logits keep their dtype on the DMA path.
    logits_r = logits_nchw.reshape(N, C, HW)
    if logits_r.dtype != jnp.bfloat16:
        logits_r = logits_r.astype(jnp.float32)
    targets_r = targets_nhw.reshape(N, 1, HW).astype(jnp.int32)

    # Only pad (a copy) when HW is not a multiple of 128 — and then by at most
    # 127 pixels.  Ragged row-tiles are otherwise handled in-kernel.
    if hw_pad != HW:
        pad = hw_pad - HW
        logits_r = jnp.pad(logits_r, ((0, 0), (0, 0), (0, pad)))
        targets_r = jnp.pad(targets_r, ((0, 0), (0, 0), (0, pad)))

    logits4 = logits_r.reshape(N, C, R, 128)
    targets4 = targets_r.reshape(N, 1, R, 128)

    # Row-tile: a multiple of 8 (or the full row count), sized so the per-tile
    # f32 working set (~2C slabs of (tile_r,128)) plus double-buffered inputs
    # stays a few MiB — comfortably inside v5e's 16 MiB scoped-VMEM default
    # and v7x's smaller VMEM.
    budget_rows = min(512, max(8, (4096 // max(C, 1)) // 8 * 8))
    tile_r = R if R <= budget_rows else budget_rows
    n_row_tiles = pl.cdiv(R, tile_r)
    acc_r = 8 if tile_r % 8 == 0 else tile_r

    need_pad_mask = (hw_pad != HW) or (R % tile_r != 0)

    kernel = functools.partial(
        _dice_sums_kernel,
        num_classes=C,
        ignore_index=ignore_index,
        hw_valid=HW,
        tile_r=tile_r,
        acc_r=acc_r,
        need_pad_mask=need_pad_mask,
    )

    inter_acc, union_acc = pl.pallas_call(
        kernel,
        out_shape=(jax.ShapeDtypeStruct((N, C, acc_r, 128), jnp.float32),
                   jax.ShapeDtypeStruct((N, C, acc_r, 128), jnp.float32)),
        grid_spec=pltpu.PrefetchScalarGridSpec(
            num_scalar_prefetch=0,
            grid=(N, n_row_tiles),
            in_specs=[
                pl.BlockSpec((pl.Squeezed(), C, tile_r, 128),
                             lambda n, i: (n, 0, i, 0)),
                pl.BlockSpec((pl.Squeezed(), 1, tile_r, 128),
                             lambda n, i: (n, 0, i, 0)),
            ],
            out_specs=(
                pl.BlockSpec((pl.Squeezed(), C, acc_r, 128),
                             lambda n, i: (n, 0, 0, 0)),
                pl.BlockSpec((pl.Squeezed(), C, acc_r, 128),
                             lambda n, i: (n, 0, 0, 0)),
            ),
        ),
        compiler_params=pltpu.CompilerParams(
            dimension_semantics=("parallel", "arbitrary")),
    )(logits4, targets4)

    # Tiny epilogue in plain JAX: one cross-lane/batch reduce + dice formula.
    inter = jnp.sum(inter_acc, axis=(0, 2, 3))             # (C,)
    union = jnp.sum(union_acc, axis=(0, 2, 3))             # (C,)
    dice = (2.0 * inter + smooth) / (union + smooth)
    return 1.0 - jnp.mean(dice)


def _dice_loss_ref(logits, targets, smooth=1.0, ignore_index=None):
    """Pure-JAX reference mirroring the PyTorch module."""
    num_classes = logits.shape[1]
    probs = jax.nn.softmax(logits.astype(jnp.float32), axis=1)
    one_hot = jax.nn.one_hot(targets, num_classes, dtype=jnp.float32)
    one_hot = jnp.transpose(one_hot, (0, 3, 1, 2))
    if ignore_index is not None:
        mask = (targets != ignore_index)[:, None, :, :].astype(jnp.float32)
        probs = probs * mask
        one_hot = one_hot * mask
    inter = jnp.sum(probs * one_hot, axis=(0, 2, 3))
    union = jnp.sum(probs, axis=(0, 2, 3)) + jnp.sum(one_hot, axis=(0, 2, 3))
    dice = (2.0 * inter + smooth) / (union + smooth)
    return 1.0 - jnp.mean(dice)


if __name__ == "__main__":
    key = jax.random.PRNGKey(0)
    k_logits, k_targets, k_logits2, k_targets2 = jax.random.split(key, 4)

    N, C, H, W = 2, 4, 16, 16
    logits = jax.random.normal(k_logits, (N, C, H, W), dtype=jnp.float32)
    targets = jax.random.randint(k_targets, (N, H, W), 0, C, dtype=jnp.int32)

    # f32, no ignore_index
    loss = jax.block_until_ready(dice_loss(logits, targets, smooth=1.0))
    ref = _dice_loss_ref(logits, targets, smooth=1.0)
    assert jnp.allclose(loss, ref, rtol=1e-3, atol=1e-3), (loss, ref)

    # ignore_index path
    loss_ig = jax.block_until_ready(
        dice_loss(logits, targets, smooth=1.0, ignore_index=2))
    ref_ig = _dice_loss_ref(logits, targets, smooth=1.0, ignore_index=2)
    assert jnp.allclose(loss_ig, ref_ig, rtol=1e-3, atol=1e-3), (loss_ig, ref_ig)

    # bf16 logits path (bf16 DMA, f32 compute in-kernel)
    logits_bf16 = logits.astype(jnp.bfloat16)
    loss_bf = jax.block_until_ready(dice_loss(logits_bf16, targets, smooth=1.0))
    ref_bf = _dice_loss_ref(logits_bf16, targets, smooth=1.0)
    assert jnp.allclose(loss_bf, ref_bf, rtol=1e-3, atol=1e-3), (loss_bf, ref_bf)

    # Non-128-multiple spatial size (exercises the pad/validity mask path).
    H2, W2 = 13, 13
    logits2 = jax.random.normal(k_logits2, (N, C, H2, W2), dtype=jnp.float32)
    targets2 = jax.random.randint(k_targets2, (N, H2, W2), 0, C, dtype=jnp.int32)
    loss2 = jax.block_until_ready(
        dice_loss(logits2, targets2, smooth=1.0, ignore_index=1))
    ref2 = _dice_loss_ref(logits2, targets2, smooth=1.0, ignore_index=1)
    assert jnp.allclose(loss2, ref2, rtol=1e-3, atol=1e-3), (loss2, ref2)

    print("KERNEL_OK")
</pallas_src>

<mosaic_0001>
module attributes {stable_mosaic.version = 11 : i64} {
  func.func @_dice_sums_kernel(%arg0: i32, %arg1: i32, %arg2: memref<1x4x2x128xf32, #tpu.memory_space<vmem>>, %arg3: memref<1x1x2x128xi32, #tpu.memory_space<vmem>>, %arg4: memref<1x4x2x128xf32, #tpu.memory_space<vmem>>, %arg5: memref<1x4x2x128xf32, #tpu.memory_space<vmem>>) attributes {dimension_semantics = [#tpu.dimension_semantics<parallel>, #tpu.dimension_semantics<arbitrary>], iteration_bounds = array<i64: 2, 1>, scalar_prefetch = 0 : i64, scratch_operands = 0 : i64, tpu.core_type = #tpu.core_type<tc>, window_params = [{transform_indices = @transform_0, window_bounds = array<i64: 1, 4, 2, 128>}, {transform_indices = @transform_1, window_bounds = array<i64: 1, 1, 2, 128>}, {transform_indices = @transform_2, window_bounds = array<i64: 1, 4, 2, 128>}, {transform_indices = @transform_3, window_bounds = array<i64: 1, 4, 2, 128>}]} {
    %c0_i32 = arith.constant 0 : i32
    %0 = arith.cmpi eq, %arg1, %c0_i32 : i32
    %1 = arith.extui %0 : i1 to i32
    %c0_i32_0 = arith.constant 0 : i32
    %2 = arith.cmpi ne, %1, %c0_i32_0 : i32
    scf.if %2 {
      %cst = arith.constant 0.000000e+00 : f32
      %104 = vector.broadcast %cst : f32 to vector<4x2x128xf32>
      %c0_82 = arith.constant 0 : index
      %c0_83 = arith.constant 0 : index
      %c0_84 = arith.constant 0 : index
      %c0_85 = arith.constant 0 : index
      %105 = vector.load %arg4[%c0_82, %c0_83, %c0_84, %c0_85] : memref<1x4x2x128xf32, #tpu.memory_space<vmem>>, vector<1x4x2x128xf32>
      %106 = vector.shape_cast %105 : vector<1x4x2x128xf32> to vector<4x2x128xf32>
      %107 = vector.shape_cast %104 : vector<4x2x128xf32> to vector<1x4x2x128xf32>
      tpu.vector_store %arg4[%c0_82, %c0_83, %c0_84, %c0_85], %107 {strides = array<i32>} : memref<1x4x2x128xf32, #tpu.memory_space<vmem>>, vector<1x4x2x128xf32>,
      %cst_86 = arith.constant 0.000000e+00 : f32
      %108 = vector.broadcast %cst_86 : f32 to vector<4x2x128xf32>
      %c0_87 = arith.constant 0 : index
      %c0_88 = arith.constant 0 : index
      %c0_89 = arith.constant 0 : index
      %c0_90 = arith.constant 0 : index
      %109 = vector.load %arg5[%c0_87, %c0_88, %c0_89, %c0_90] : memref<1x4x2x128xf32, #tpu.memory_space<vmem>>, vector<1x4x2x128xf32>
      %110 = vector.shape_cast %109 : vector<1x4x2x128xf32> to vector<4x2x128xf32>
      %111 = vector.shape_cast %108 : vector<4x2x128xf32> to vector<1x4x2x128xf32>
      tpu.vector_store %arg5[%c0_87, %c0_88, %c0_89, %c0_90], %111 {strides = array<i32>} : memref<1x4x2x128xf32, #tpu.memory_space<vmem>>, vector<1x4x2x128xf32>,
    } else {
    }
    %c0 = arith.constant 0 : index
    %c0_1 = arith.constant 0 : index
    %c0_2 = arith.constant 0 : index
    %c0_3 = arith.constant 0 : index
    %3 = vector.load %arg3[%c0, %c0_1, %c0_2, %c0_3] : memref<1x1x2x128xi32, #tpu.memory_space<vmem>>, vector<1x1x2x128xi32>
    %4 = vector.shape_cast %3 : vector<1x1x2x128xi32> to vector<2x128xi32>
    %c0_4 = arith.constant 0 : index
    %c0_5 = arith.constant 0 : index
    %c0_6 = arith.constant 0 : index
    %c0_7 = arith.constant 0 : index
    %5 = vector.load %arg2[%c0_4, %c0_5, %c0_6, %c0_7] : memref<1x4x2x128xf32, #tpu.memory_space<vmem>>, vector<1x1x2x128xf32>
    %6 = vector.shape_cast %5 : vector<1x1x2x128xf32> to vector<2x128xf32>
    %c0_8 = arith.constant 0 : index
    %c1 = arith.constant 1 : index
    %c0_9 = arith.constant 0 : index
    %c0_10 = arith.constant 0 : index
    %7 = vector.load %arg2[%c0_8, %c1, %c0_9, %c0_10] : memref<1x4x2x128xf32, #tpu.memory_space<vmem>>, vector<1x1x2x128xf32>
    %8 = vector.shape_cast %7 : vector<1x1x2x128xf32> to vector<2x128xf32>
    %c0_11 = arith.constant 0 : index
    %c2 = arith.constant 2 : index
    %c0_12 = arith.constant 0 : index
    %c0_13 = arith.constant 0 : index
    %9 = vector.load %arg2[%c0_11, %c2, %c0_12, %c0_13] : memref<1x4x2x128xf32, #tpu.memory_space<vmem>>, vector<1x1x2x128xf32>
    %10 = vector.shape_cast %9 : vector<1x1x2x128xf32> to vector<2x128xf32>
    %c0_14 = arith.constant 0 : index
    %c3 = arith.constant 3 : index
    %c0_15 = arith.constant 0 : index
    %c0_16 = arith.constant 0 : index
    %11 = vector.load %arg2[%c0_14, %c3, %c0_15, %c0_16] : memref<1x4x2x128xf32, #tpu.memory_space<vmem>>, vector<1x1x2x128xf32>
    %12 = vector.shape_cast %11 : vector<1x1x2x128xf32> to vector<2x128xf32>
    %13 = arith.maximumf %6, %8 : vector<2x128xf32>
    %14 = arith.maximumf %13, %10 : vector<2x128xf32>
    %15 = arith.maximumf %14, %12 : vector<2x128xf32>
    %16 = arith.subf %6, %15 : vector<2x128xf32>
    %17 = math.exp %16 : vector<2x128xf32>
    %18 = arith.subf %8, %15 : vector<2x128xf32>
    %19 = math.exp %18 : vector<2x128xf32>
    %20 = arith.subf %10, %15 : vector<2x128xf32>
    %21 = math.exp %20 : vector<2x128xf32>
    %22 = arith.subf %12, %15 : vector<2x128xf32>
    %23 = math.exp %22 : vector<2x128xf32>
    %24 = arith.addf %17, %19 : vector<2x128xf32>
    %25 = arith.addf %24, %21 : vector<2x128xf32>
    %26 = arith.addf %25, %23 : vector<2x128xf32>
    %27 = tpu.reciprocal %26 {approx = true} : vector<2x128xf32> -> vector<2x128xf32>
    %28 = arith.mulf %17, %27 : vector<2x128xf32>
    %c0_i32_17 = arith.constant 0 : i32
    %29 = vector.broadcast %c0_i32_17 : i32 to vector<2x128xi32>
    %30 = arith.cmpi eq, %4, %29 : vector<2x128xi32>
    %31 = arith.extui %30 : vector<2x128xi1> to vector<2x128xi32>
    %32 = arith.sitofp %31 : vector<2x128xi32> to vector<2x128xf32>
    %c0_18 = arith.constant 0 : index
    %c0_19 = arith.constant 0 : index
    %c0_20 = arith.constant 0 : index
    %c0_21 = arith.constant 0 : index
    %33 = vector.load %arg4[%c0_18, %c0_19, %c0_20, %c0_21] : memref<1x4x2x128xf32, #tpu.memory_space<vmem>>, vector<1x1x2x128xf32>
    %34 = vector.shape_cast %33 : vector<1x1x2x128xf32> to vector<2x128xf32>
    %35 = arith.mulf %28, %32 : vector<2x128xf32>
    %36 = arith.addf %34, %35 : vector<2x128xf32>
    %c0_22 = arith.constant 0 : index
    %c0_23 = arith.constant 0 : index
    %c0_24 = arith.constant 0 : index
    %c0_25 = arith.constant 0 : index
    %37 = vector.load %arg4[%c0_22, %c0_23, %c0_24, %c0_25] : memref<1x4x2x128xf32, #tpu.memory_space<vmem>>, vector<1x1x2x128xf32>
    %38 = vector.shape_cast %37 : vector<1x1x2x128xf32> to vector<2x128xf32>
    %39 = vector.shape_cast %36 : vector<2x128xf32> to vector<1x1x2x128xf32>
    tpu.vector_store %arg4[%c0_22, %c0_23, %c0_24, %c0_25], %39 {strides = array<i32>} : memref<1x4x2x128xf32, #tpu.memory_space<vmem>>, vector<1x1x2x128xf32>,
    %c0_26 = arith.constant 0 : index
    %c0_27 = arith.constant 0 : index
    %c0_28 = arith.constant 0 : index
    %c0_29 = arith.constant 0 : index
    %40 = vector.load %arg5[%c0_26, %c0_27, %c0_28, %c0_29] : memref<1x4x2x128xf32, #tpu.memory_space<vmem>>, vector<1x1x2x128xf32>
    %41 = vector.shape_cast %40 : vector<1x1x2x128xf32> to vector<2x128xf32>
    %42 = arith.addf %28, %32 : vector<2x128xf32>
    %43 = arith.addf %41, %42 : vector<2x128xf32>
    %c0_30 = arith.constant 0 : index
    %c0_31 = arith.constant 0 : index
    %c0_32 = arith.constant 0 : index
    %c0_33 = arith.constant 0 : index
    %44 = vector.load %arg5[%c0_30, %c0_31, %c0_32, %c0_33] : memref<1x4x2x128xf32, #tpu.memory_space<vmem>>, vector<1x1x2x128xf32>
    %45 = vector.shape_cast %44 : vector<1x1x2x128xf32> to vector<2x128xf32>
    %46 = vector.shape_cast %43 : vector<2x128xf32> to vector<1x1x2x128xf32>
    tpu.vector_store %arg5[%c0_30, %c0_31, %c0_32, %c0_33], %46 {strides = array<i32>} : memref<1x4x2x128xf32, #tpu.memory_space<vmem>>, vector<1x1x2x128xf32>,
    %47 = arith.mulf %19, %27 : vector<2x128xf32>
    %c1_i32 = arith.constant 1 : i32
    %48 = vector.broadcast %c1_i32 : i32 to vector<2x128xi32>
    %49 = arith.cmpi eq, %4, %48 : vector<2x128xi32>
    %50 = arith.extui %49 : vector<2x128xi1> to vector<2x128xi32>
    %51 = arith.sitofp %50 : vector<2x128xi32> to vector<2x128xf32>
    %c0_34 = arith.constant 0 : index
    %c1_35 = arith.constant 1 : index
    %c0_36 = arith.constant 0 : index
    %c0_37 = arith.constant 0 : index
    %52 = vector.load %arg4[%c0_34, %c1_35, %c0_36, %c0_37] : memref<1x4x2x128xf32, #tpu.memory_space<vmem>>, vector<1x1x2x128xf32>
    %53 = vector.shape_cast %52 : vector<1x1x2x128xf32> to vector<2x128xf32>
    %54 = arith.mulf %47, %51 : vector<2x128xf32>
    %55 = arith.addf %53, %54 : vector<2x128xf32>
    %c0_38 = arith.constant 0 : index
    %c1_39 = arith.constant 1 : index
    %c0_40 = arith.constant 0 : index
    %c0_41 = arith.constant 0 : index
    %56 = vector.load %arg4[%c0_38, %c1_39, %c0_40, %c0_41] : memref<1x4x2x128xf32, #tpu.memory_space<vmem>>, vector<1x1x2x128xf32>
    %57 = vector.shape_cast %56 : vector<1x1x2x128xf32> to vector<2x128xf32>
    %58 = vector.shape_cast %55 : vector<2x128xf32> to vector<1x1x2x128xf32>
    tpu.vector_store %arg4[%c0_38, %c1_39, %c0_40, %c0_41], %58 {strides = array<i32>} : memref<1x4x2x128xf32, #tpu.memory_space<vmem>>, vector<1x1x2x128xf32>,
    %c0_42 = arith.constant 0 : index
    %c1_43 = arith.constant 1 : index
    %c0_44 = arith.constant 0 : index
    %c0_45 = arith.constant 0 : index
    %59 = vector.load %arg5[%c0_42, %c1_43, %c0_44, %c0_45] : memref<1x4x2x128xf32, #tpu.memory_space<vmem>>, vector<1x1x2x128xf32>
    %60 = vector.shape_cast %59 : vector<1x1x2x128xf32> to vector<2x128xf32>
    %61 = arith.addf %47, %51 : vector<2x128xf32>
    %62 = arith.addf %60, %61 : vector<2x128xf32>
    %c0_46 = arith.constant 0 : index
    %c1_47 = arith.constant 1 : index
    %c0_48 = arith.constant 0 : index
    %c0_49 = arith.constant 0 : index
    %63 = vector.load %arg5[%c0_46, %c1_47, %c0_48, %c0_49] : memref<1x4x2x128xf32, #tpu.memory_space<vmem>>, vector<1x1x2x128xf32>
    %64 = vector.shape_cast %63 : vector<1x1x2x128xf32> to vector<2x128xf32>
    %65 = vector.shape_cast %62 : vector<2x128xf32> to vector<1x1x2x128xf32>
    tpu.vector_store %arg5[%c0_46, %c1_47, %c0_48, %c0_49], %65 {strides = array<i32>} : memref<1x4x2x128xf32, #tpu.memory_space<vmem>>, vector<1x1x2x128xf32>,
    %66 = arith.mulf %21, %27 : vector<2x128xf32>
    %c2_i32 = arith.constant 2 : i32
    %67 = vector.broadcast %c2_i32 : i32 to vector<2x128xi32>
    %68 = arith.cmpi eq, %4, %67 : vector<2x128xi32>
    %69 = arith.extui %68 : vector<2x128xi1> to vector<2x128xi32>
    %70 = arith.sitofp %69 : vector<2x128xi32> to vector<2x128xf32>
    %c0_50 = arith.constant 0 : index
    %c2_51 = arith.constant 2 : index
    %c0_52 = arith.constant 0 : index
    %c0_53 = arith.constant 0 : index
    %71 = vector.load %arg4[%c0_50, %c2_51, %c0_52, %c0_53] : memref<1x4x2x128xf32, #tpu.memory_space<vmem>>, vector<1x1x2x128xf32>
    %72 = vector.shape_cast %71 : vector<1x1x2x128xf32> to vector<2x128xf32>
    %73 = arith.mulf %66, %70 : vector<2x128xf32>
    %74 = arith.addf %72, %73 : vector<2x128xf32>
    %c0_54 = arith.constant 0 : index
    %c2_55 = arith.constant 2 : index
    %c0_56 = arith.constant 0 : index
    %c0_57 = arith.constant 0 : index
    %75 = vector.load %arg4[%c0_54, %c2_55, %c0_56, %c0_57] : memref<1x4x2x128xf32, #tpu.memory_space<vmem>>, vector<1x1x2x128xf32>
    %76 = vector.shape_cast %75 : vector<1x1x2x128xf32> to vector<2x128xf32>
    %77 = vector.shape_cast %74 : vector<2x128xf32> to vector<1x1x2x128xf32>
    tpu.vector_store %arg4[%c0_54, %c2_55, %c0_56, %c0_57], %77 {strides = array<i32>} : memref<1x4x2x128xf32, #tpu.memory_space<vmem>>, vector<1x1x2x128xf32>,
    %c0_58 = arith.constant 0 : index
    %c2_59 = arith.constant 2 : index
    %c0_60 = arith.constant 0 : index
    %c0_61 = arith.constant 0 : index
    %78 = vector.load %arg5[%c0_58, %c2_59, %c0_60, %c0_61] : memref<1x4x2x128xf32, #tpu.memory_space<vmem>>, vector<1x1x2x128xf32>
    %79 = vector.shape_cast %78 : vector<1x1x2x128xf32> to vector<2x128xf32>
    %80 = arith.addf %66, %70 : vector<2x128xf32>
    %81 = arith.addf %79, %80 : vector<2x128xf32>
    %c0_62 = arith.constant 0 : index
    %c2_63 = arith.constant 2 : index
    %c0_64 = arith.constant 0 : index
    %c0_65 = arith.constant 0 : index
    %82 = vector.load %arg5[%c0_62, %c2_63, %c0_64, %c0_65] : memref<1x4x2x128xf32, #tpu.memory_space<vmem>>, vector<1x1x2x128xf32>
    %83 = vector.shape_cast %82 : vector<1x1x2x128xf32> to vector<2x128xf32>
    %84 = vector.shape_cast %81 : vector<2x128xf32> to vector<1x1x2x128xf32>
    tpu.vector_store %arg5[%c0_62, %c2_63, %c0_64, %c0_65], %84 {strides = array<i32>} : memref<1x4x2x128xf32, #tpu.memory_space<vmem>>, vector<1x1x2x128xf32>,
    %85 = arith.mulf %23, %27 : vector<2x128xf32>
    %c3_i32 = arith.constant 3 : i32
    %86 = vector.broadcast %c3_i32 : i32 to vector<2x128xi32>
    %87 = arith.cmpi eq, %4, %86 : vector<2x128xi32>
    %88 = arith.extui %87 : vector<2x128xi1> to vector<2x128xi32>
    %89 = arith.sitofp %88 : vector<2x128xi32> to vector<2x128xf32>
    %c0_66 = arith.constant 0 : index
    %c3_67 = arith.constant 3 : index
    %c0_68 = arith.constant 0 : index
    %c0_69 = arith.constant 0 : index
    %90 = vector.load %arg4[%c0_66, %c3_67, %c0_68, %c0_69] : memref<1x4x2x128xf32, #tpu.memory_space<vmem>>, vector<1x1x2x128xf32>
    %91 = vector.shape_cast %90 : vector<1x1x2x128xf32> to vector<2x128xf32>
    %92 = arith.mulf %85, %89 : vector<2x128xf32>
    %93 = arith.addf %91, %92 : vector<2x128xf32>
    %c0_70 = arith.constant 0 : index
    %c3_71 = arith.constant 3 : index
    %c0_72 = arith.constant 0 : index
    %c0_73 = arith.constant 0 : index
    %94 = vector.load %arg4[%c0_70, %c3_71, %c0_72, %c0_73] : memref<1x4x2x128xf32, #tpu.memory_space<vmem>>, vector<1x1x2x128xf32>
    %95 = vector.shape_cast %94 : vector<1x1x2x128xf32> to vector<2x128xf32>
    %96 = vector.shape_cast %93 : vector<2x128xf32> to vector<1x1x2x128xf32>
    tpu.vector_store %arg4[%c0_70, %c3_71, %c0_72, %c0_73], %96 {strides = array<i32>} : memref<1x4x2x128xf32, #tpu.memory_space<vmem>>, vector<1x1x2x128xf32>,
    %c0_74 = arith.constant 0 : index
    %c3_75 = arith.constant 3 : index
    %c0_76 = arith.constant 0 : index
    %c0_77 = arith.constant 0 : index
    %97 = vector.load %arg5[%c0_74, %c3_75, %c0_76, %c0_77] : memref<1x4x2x128xf32, #tpu.memory_space<vmem>>, vector<1x1x2x128xf32>
    %98 = vector.shape_cast %97 : vector<1x1x2x128xf32> to vector<2x128xf32>
    %99 = arith.addf %85, %89 : vector<2x128xf32>
    %100 = arith.addf %98, %99 : vector<2x128xf32>
    %c0_78 = arith.constant 0 : index
    %c3_79 = arith.constant 3 : index
    %c0_80 = arith.constant 0 : index
    %c0_81 = arith.constant 0 : index
    %101 = vector.load %arg5[%c0_78, %c3_79, %c0_80, %c0_81] : memref<1x4x2x128xf32, #tpu.memory_space<vmem>>, vector<1x1x2x128xf32>
    %102 = vector.shape_cast %101 : vector<1x1x2x128xf32> to vector<2x128xf32>
    %103 = vector.shape_cast %100 : vector<2x128xf32> to vector<1x1x2x128xf32>
    tpu.vector_store %arg5[%c0_78, %c3_79, %c0_80, %c0_81], %103 {strides = array<i32>} : memref<1x4x2x128xf32, #tpu.memory_space<vmem>>, vector<1x1x2x128xf32>,
    return
  }
  func.func @transform_0(%arg0: i32, %arg1: i32) -> (i32, i32, i32, i32) {
    %c0_i32 = arith.constant 0 : i32
    %c0_i32_0 = arith.constant 0 : i32
    %c0_i32_1 = arith.constant 0 : i32
    return %arg0, %c0_i32, %arg1, %c0_i32_0 : i32, i32, i32, i32
  }
  func.func @transform_1(%arg0: i32, %arg1: i32) -> (i32, i32, i32, i32) {
    %c0_i32 = arith.constant 0 : i32
    %c0_i32_0 = arith.constant 0 : i32
    %c0_i32_1 = arith.constant 0 : i32
    return %arg0, %c0_i32, %arg1, %c0_i32_0 : i32, i32, i32, i32
  }
  func.func @transform_2(%arg0: i32, %arg1: i32) -> (i32, i32, i32, i32) {
    %c0_i32 = arith.constant 0 : i32
    %c0_i32_0 = arith.constant 0 : i32
    %c0_i32_1 = arith.constant 0 : i32
    %c0_i32_2 = arith.constant 0 : i32
    return %arg0, %c0_i32, %c0_i32_0, %c0_i32_1 : i32, i32, i32, i32
  }
  func.func @transform_3(%arg0: i32, %arg1: i32) -> (i32, i32, i32, i32) {
    %c0_i32 = arith.constant 0 : i32
    %c0_i32_0 = arith.constant 0 : i32
    %c0_i32_1 = arith.constant 0 : i32
    %c0_i32_2 = arith.constant 0 : i32
    return %arg0, %c0_i32, %c0_i32_0, %c0_i32_1 : i32, i32, i32, i32
  }
}

</mosaic_0001>

<llo_original>
// kernel: tpu_custom_call.1
$region0: #{tpu_custom_call.1}
  #allocation0 [shape = 'u32[]', space=smem, size = 0x4, offset = 0x4, fixed_abs, tag = 'smem constant byte address 0x4 - core index']
  #allocation1 [shape = 'u32[144,128]{1,0:T(1,128)}', space=vmem, size = 0x12000, scoped, tag = 'internal scratch']
  %s0 = inlined_call_operand.hbm [shape: f32[2,4,2,128], index: 0, kind: input, shape index: {}]
  %s1 = inlined_call_operand.hbm [shape: s32[2,1,2,128], index: 1, kind: input, shape index: {}]
  %s2 = inlined_call_operand.hbm [shape: f32[2,4,2,128], index: 2, kind: output, shape index: {0}]
  %s3 = inlined_call_operand.hbm [shape: f32[2,4,2,128], index: 3, kind: output, shape index: {1}]
  %4 = xla_tuple %s2, %s3
  %s5 = sld [smem:[#allocation0]]
  $region61: #{tpu_custom_call.1} parent=0
    _
  %s7 = ssub.s32 1, %s5
  %s8 = scalar_select 0, %s7, %s5
  $region1: #{tpu_custom_call.1} parent=0
    #allocation2 [shape = 'u8[8192]{0}', space=vmem, size = 0x2000, scoped, tag = 'input window, operand 0']
    #allocation3 [shape = 's32[2]{0}', space=sflag, size = 0x8, scoped, tag = 'scoped memory for tpu_custom_call.1']
    #allocation4 [shape = 's32[2]{0}', space=sflag, size = 0x8, scoped, tag = 'scoped memory for tpu_custom_call.1']
    #allocation5 [shape = 'u8[2048]{0}', space=vmem, size = 0x800, scoped, tag = 'input window, operand 1']
    #allocation6 [shape = 's32[2]{0}', space=sflag, size = 0x8, scoped, tag = 'scoped memory for tpu_custom_call.1']
    #allocation7 [shape = 'u8[8192]{0}', space=vmem, size = 0x2000, scoped, tag = 'output window, operand 0']
    #allocation8 [shape = 'u8[8192]{0}', space=vmem, size = 0x2000, scoped, tag = 'output window, operand 1']
    #allocation9 [shape = 's32[2]{0}', space=sflag, size = 0x8, scoped, tag = 'scoped memory for tpu_custom_call.1']
    %9 = vsyncpa [#allocation3], 0
    %s10 = scalar_lea.sflag [#allocation3], 1
    %11 = vsyncpa %s10, 0
    %12 = vsyncpa [#allocation6], 0
    %s13 = scalar_lea.sflag [#allocation6], 1
    %14 = vsyncpa %s13, 0
    %15 = vsyncpa [#allocation4], 0
    %s16 = scalar_lea.sflag [#allocation4], 1
    %17 = vsyncpa %s16, 0
    %18 = vsyncpa [#allocation9], 0
    %s19 = scalar_lea.sflag [#allocation9], 1
    %20 = vsyncpa %s19, 0
    loop: start=0, step=1, limit=4
    $region2: #{tpu_custom_call.1} parent=1 // loop_pre_header
      _
    $region3: #{tpu_custom_call.1} parent=1 // loop_header
      %s22 = sphi 0, %s26
      %p23 = scmp.ge.s32.totalorder %s22, 4
      %s29 = sphi 0, %s41
      %s30 = sphi 0, %s37
      %s31 = sphi 0, %s29
      %s32 = sphi 0, %s30
      %s33 = sphi 0, %s31
      %s34 = sphi 0, %s32
      %s46 = sphi 0, %s48
      %s49 = sphi 0, %s46
      %s50 = sphi 0, %s49
      %s66 = sphi 0, %s50
      %s74 = sphi 0, %s76
      %s77 = sphi 0, %s74
      %s78 = sphi 0, %s77
      %s94 = sphi 0, %s78
      %s100 = sphi 0, %s102
      %s103 = sphi 0, %s100
      %s104 = sphi 0, %s103
      %s120 = sphi 0, %s104
      %s126 = sphi 0, %s128
      %s129 = sphi 0, %s126
      %s130 = sphi 0, %s129
      %s146 = sphi 0, %s130
    $region4: #{tpu_custom_call.1} parent=1 // loop_header_branch
      %25 = sbr.rel (%p23) target = $region8
    $region5: #{tpu_custom_call.1} parent=1 // loop_body
      %s27 = ssub.s32 %s22, 1
      %s28 = ssub.s32 %s22, 2
      %s35 = sadd.s32 1, %s30
      %p36 = scmp.ge.s32.totalorder %s35, 1
      %s37 = scalar_select %p36, 0, %s35
      %s38 = sadd.s32 1, %s29
      %s39 = scalar_select %p36, %s38, %s29
      %p40 = scmp.ge.s32.totalorder %s39, 2
      %s41 = scalar_select %p40, 0, %s39
      %s42 = ssub.s32 %s29, %s41
      %s43 = ssub.s32 %s30, %s37
      %s44 = sor.u32 %s42, %s43
      %p45 = scmp.eq.s32.totalorder %s44, 0
      %s47 = sadd.s32 %s46, 1
      %s48 = scalar_select %p45, %s46, %s47
      %p51 = pneg %p45
      %p52 = scmp.eq.s32.totalorder %s22, 1
      %p53 = por %p51, %p52
      %p54 = scmp.ne.s32.totalorder %s46, %s49
      %p55 = scmp.eq.s32.totalorder %s22, 0
      %p56 = por %p54, %p55
      %p57 = scmp.ne.s32.totalorder %s46, %s49
      %p58 = scmp.eq.s32.totalorder %s27, 1
      %p59 = por %p57, %p58
      %p60 = scmp.ne.s32.totalorder %s49, %s50
      %p61 = scmp.eq.s32.totalorder %s27, 0
      %p62 = por %p60, %p61
      %p63 = scmp.ne.s32.totalorder %s49, %s50
      %p64 = scmp.eq.s32.totalorder %s28, 1
      %p65 = por %p63, %p64
      %p67 = scmp.ne.s32.totalorder %s50, %s66
      %p68 = scmp.eq.s32.totalorder %s28, 0
      %p69 = por %p67, %p68
      %s70 = ssub.s32 %s29, %s41
      %s71 = ssub.s32 %s30, %s37
      %s72 = sor.u32 %s70, %s71
      %p73 = scmp.eq.s32.totalorder %s72, 0
      %s75 = sadd.s32 %s74, 1
      %s76 = scalar_select %p73, %s74, %s75
      %p79 = pneg %p73
      %p80 = scmp.eq.s32.totalorder %s22, 1
      %p81 = por %p79, %p80
      %p82 = scmp.ne.s32.totalorder %s74, %s77
      %p83 = scmp.eq.s32.totalorder %s22, 0
      %p84 = por %p82, %p83
      %p85 = scmp.ne.s32.totalorder %s74, %s77
      %p86 = scmp.eq.s32.totalorder %s27, 1
      %p87 = por %p85, %p86
      %p88 = scmp.ne.s32.totalorder %s77, %s78
      %p89 = scmp.eq.s32.totalorder %s27, 0
      %p90 = por %p88, %p89
      %p91 = scmp.ne.s32.totalorder %s77, %s78
      %p92 = scmp.eq.s32.totalorder %s28, 1
      %p93 = por %p91, %p92
      %p95 = scmp.ne.s32.totalorder %s78, %s94
      %p96 = scmp.eq.s32.totalorder %s28, 0
      %p97 = por %p95, %p96
      %s98 = ssub.s32 %s29, %s41
      %p99 = scmp.eq.s32.totalorder %s98, 0
      %s101 = sadd.s32 %s100, 1
      %s102 = scalar_select %p99, %s100, %s101
      %p105 = pneg %p99
      %p106 = scmp.eq.s32.totalorder %s22, 1
      %p107 = por %p105, %p106
      %p108 = scmp.ne.s32.totalorder %s100, %s103
      %p109 = scmp.eq.s32.totalorder %s22, 0
      %p110 = por %p108, %p109
      %p111 = scmp.ne.s32.totalorder %s100, %s103
      %p112 = scmp.eq.s32.totalorder %s27, 1
      %p113 = por %p111, %p112
      %p114 = scmp.ne.s32.totalorder %s103, %s104
      %p115 = scmp.eq.s32.totalorder %s27, 0
      %p116 = por %p114, %p115
      %p117 = scmp.ne.s32.totalorder %s103, %s104
      %p118 = scmp.eq.s32.totalorder %s28, 1
      %p119 = por %p117, %p118
      %p121 = scmp.ne.s32.totalorder %s104, %s120
      %p122 = scmp.eq.s32.totalorder %s28, 0
      %p123 = por %p121, %p122
      %s124 = ssub.s32 %s29, %s41
      %p125 = scmp.eq.s32.totalorder %s124, 0
      %s127 = sadd.s32 %s126, 1
      %s128 = scalar_select %p125, %s126, %s127
      %p131 = pneg %p125
      %p132 = scmp.eq.s32.totalorder %s22, 1
      %p133 = por %p131, %p132
      %p134 = scmp.ne.s32.totalorder %s126, %s129
      %p135 = scmp.eq.s32.totalorder %s22, 0
      %p136 = por %p134, %p135
      %p137 = scmp.ne.s32.totalorder %s126, %s129
      %p138 = scmp.eq.s32.totalorder %s27, 1
      %p139 = por %p137, %p138
      %p140 = scmp.ne.s32.totalorder %s129, %s130
      %p141 = scmp.eq.s32.totalorder %s27, 0
      %p142 = por %p140, %p141
      %p143 = scmp.ne.s32.totalorder %s129, %s130
      %p144 = scmp.eq.s32.totalorder %s28, 1
      %p145 = por %p143, %p144
      %p147 = scmp.ne.s32.totalorder %s130, %s146
      %p148 = scmp.eq.s32.totalorder %s28, 0
      %p149 = por %p147, %p148
      %p150 = scmp.le.s32.totalorder 1, %s22
      %p151 = scmp.lt.s32.totalorder %s22, 3
      %p152 = pnand %p150, %p151
      %p153 = pneg %p152
      // Predicated region
      $region9: #{tpu_custom_call.1} parent=5 // pred_check
        _
      $region10: #{tpu_custom_call.1} parent=5 // pred_check_branch
        %155 = sbr.rel (%p152) target = $region12
      $region11: #{tpu_custom_call.1} parent=5 // pred_region
        %s156 = ssub.s32 %s22, 1
      $region12: #{tpu_custom_call.1} parent=5 // pred_fallthru
        _
      %p157 = scmp.lt.s32.totalorder %s22, 2
      // Predicated region
      $region13: #{tpu_custom_call.1} parent=5 // pred_check
        %p158 = pneg %p157
      $region14: #{tpu_custom_call.1} parent=5 // pred_check_branch
        %160 = sbr.rel (%p158) target = $region16
      $region15: #{tpu_custom_call.1} parent=5 // pred_region
        // Predicated region
        $region17: #{tpu_custom_call.1} parent=15 // pred_check
          %p161 = pneg %p56
        $region18: #{tpu_custom_call.1} parent=15 // pred_check_branch
          %163 = sbr.rel (%p161) target = $region20
        $region19: #{tpu_custom_call.1} parent=15 // pred_region
          %s164 = sand.u32 %s46, 1
          %s165 = scalar_lea.sflag [#allocation3], %s164
          %s166 = sand.u32 %s46, 1
          %s167 = smul.addr %s166, 8
          %s168 = scalar_lea.vmem [#allocation2], %s167
          %s170 = ssub.s32 128, 128
          %171 = vsyncadd %s165, %s170
          %s172 = smul.addr %s29, 4
          %s173 = sadd.s32 %s30, %s172
          %s174 = smul.addr %s173, 32
          %s175 = scalar_lea.hbm %s0, %s174
          %s176 = sshll.u32 %s168, 4
          %s177 = int_to_ptr.vmem [resolvable:$true] %s176
          %182 = dma.hbm_to_vmem [thread:$0]  %s175, 128, %s177, %s165, 32, 32, 2
        $region20: #{tpu_custom_call.1} parent=15 // pred_fallthru
          _
        // Predicated region
        $region21: #{tpu_custom_call.1} parent=15 // pred_check
          %p183 = pneg %p84
        $region22: #{tpu_custom_call.1} parent=15 // pred_check_branch
          %185 = sbr.rel (%p183) target = $region24
        $region23: #{tpu_custom_call.1} parent=15 // pred_region
          %s186 = sand.u32 %s74, 1
          %s187 = scalar_lea.sflag [#allocation6], %s186
          %s188 = sand.u32 %s74, 1
          %s189 = smul.addr %s188, 2
          %s190 = scalar_lea.vmem [#allocation5], %s189
          %s192 = ssub.s32 32, 32
          %193 = vsyncadd %s187, %s192
          %s194 = sadd.s32 %s30, %s29
          %s195 = smul.addr %s194, 32
          %s196 = scalar_lea.hbm %s1, %s195
          %s198 = sshll.u32 %s190, 4
          %s199 = int_to_ptr.vmem [resolvable:$true] %s198
          %201 = dma.hbm_to_vmem [thread:$0]  %s196, 32, %s199, %s187
        $region24: #{tpu_custom_call.1} parent=15 // pred_fallthru
          _
      $region16: #{tpu_custom_call.1} parent=5 // pred_fallthru
        _
      %p202 = scmp.le.s32.totalorder 1, %s22
      %p203 = scmp.lt.s32.totalorder %s22, 3
      %p204 = pnand %p202, %p203
      %p205 = pneg %p204
      // Predicated region
      $region25: #{tpu_custom_call.1} parent=5 // pred_check
        _
      $region26: #{tpu_custom_call.1} parent=5 // pred_check_branch
        %207 = sbr.rel (%p204) target = $region28
      $region27: #{tpu_custom_call.1} parent=5 // pred_region
        %s208 = ssub.s32 %s22, 1
        %s209 = sand.u32 %s49, 1
        %s210 = scalar_lea.sflag [#allocation3], %s209
        %s211 = sand.u32 %s49, 1
        %s212 = smul.addr %s211, 8
        %s213 = scalar_lea.vmem [#allocation2], %s212
        // Predicated region
        $region29: #{tpu_custom_call.1} parent=27 // pred_check
          %p214 = pneg %p62
        $region30: #{tpu_custom_call.1} parent=27 // pred_check_branch
          %216 = sbr.rel (%p214) target = $region32
        $region31: #{tpu_custom_call.1} parent=27 // pred_region
          %217 = dma.done %s210, 128
        $region32: #{tpu_custom_call.1} parent=27 // pred_fallthru
          _
        %s218 = sand.u32 %s77, 1
        %s219 = scalar_lea.sflag [#allocation6], %s218
        %s220 = sand.u32 %s77, 1
        %s221 = smul.addr %s220, 2
        %s222 = scalar_lea.vmem [#allocation5], %s221
        // Predicated region
        $region33: #{tpu_custom_call.1} parent=27 // pred_check
          %p223 = pneg %p90
        $region34: #{tpu_custom_call.1} parent=27 // pred_check_branch
          %225 = sbr.rel (%p223) target = $region36
        $region35: #{tpu_custom_call.1} parent=27 // pred_region
          %226 = dma.done %s219, 32
        $region36: #{tpu_custom_call.1} parent=27 // pred_fallthru
          _
        %s227 = sand.u32 %s49, 1
        %s228 = scalar_lea.sflag [#allocation3], %s227
        %s229 = sand.u32 %s49, 1
        %s230 = smul.addr %s229, 8
        %s231 = scalar_lea.vmem [#allocation2], %s230
        %p232 = pneg %p62
        %p233 = pneg %p59
        %s234 = sand.u32 %s77, 1
        %s235 = scalar_lea.sflag [#allocation6], %s234
        %s236 = sand.u32 %s77, 1
        %s237 = smul.addr %s236, 2
        %s238 = scalar_lea.vmem [#allocation5], %s237
        %p239 = pneg %p90
        %p240 = pneg %p87
        %p241 = pneg %p116
        %p242 = pneg %p113
        %s243 = sand.u32 %s103, 1
        %s244 = scalar_lea.sflag [#allocation4], %s243
        %s245 = sand.u32 %s103, 1
        %s246 = smul.addr %s245, 8
        %s247 = scalar_lea.vmem [#allocation7], %s246
        %p248 = pneg %p142
        %p249 = pneg %p139
        %s250 = sand.u32 %s129, 1
        %s251 = scalar_lea.sflag [#allocation9], %s250
        %s252 = sand.u32 %s129, 1
        %s253 = smul.addr %s252, 8
        %s254 = scalar_lea.vmem [#allocation8], %s253
        %p255 = scmp.eq.s32.totalorder %s32, 0
        // Predicated region
        $region37: #{tpu_custom_call.1} parent=27 // pred_check
          %p256 = pneg %p255
        $region38: #{tpu_custom_call.1} parent=27 // pred_check_branch
          %258 = sbr.rel (%p256) target = $region40
        $region39: #{tpu_custom_call.1} parent=27 // pred_region
          %259 = vst [vmem:[%s247] sm:$0x3] 0.0
          %260 = vst [vmem:[%s247 + $0x2] sm:$0x3] 0.0
          %261 = vst [vmem:[%s247 + $0x4] sm:$0x3] 0.0
          %262 = vst [vmem:[%s247 + $0x6] sm:$0x3] 0.0
          %263 = vst [vmem:[%s254] sm:$0x3] 0.0
          %264 = vst [vmem:[%s254 + $0x2] sm:$0x3] 0.0
          %265 = vst [vmem:[%s254 + $0x4] sm:$0x3] 0.0
          %266 = vst [vmem:[%s254 + $0x6] sm:$0x3] 0.0
        $region40: #{tpu_custom_call.1} parent=27 // pred_fallthru
          _
        %v267 = vld [vmem:[%s222] sm:$0x3]
        %v268 = vld [vmem:[%s213] sm:$0x3]
        %s269 = scalar_lea.vmem %s213, 2 [#allocation2]
        %v270 = vld [vmem:[%s269] sm:$0x3]
        %s271 = scalar_lea.vmem %s213, 4 [#allocation2]
        %v272 = vld [vmem:[%s271] sm:$0x3]
        %s273 = scalar_lea.vmem %s213, 6 [#allocation2]
        %v274 = vld [vmem:[%s273] sm:$0x3]
        %v275 = vmax.f32 %v268, %v270
        %v276 = vmax.f32 %v275, %v272
        %v277 = vmax.f32 %v276, %v274
        %v278 = vsub.f32 %v268, %v277
        %v279 = vmul.f32 %v278, 1.442695
        %v280 = vpow.pop %v279
        %v281 = vsub.f32 %v270, %v277
        %v282 = vmul.f32 %v281, 1.442695
        %v283 = vpow.pop %v282
        %v284 = vsub.f32 %v272, %v277
        %v285 = vmul.f32 %v284, 1.442695
        %v286 = vpow.pop %v285
        %v287 = vsub.f32 %v274, %v277
        %v288 = vmul.f32 %v287, 1.442695
        %v289 = vpow.pop %v288
        %v290 = vadd.f32 %v280, %v283
        %v291 = vadd.f32 %v290, %v286
        %v292 = vadd.f32 %v291, %v289
        %v293 = vrcp.pop %v292
        %v294 = vmul.f32 %v280, %v293
        %vm295 = vcmp.eq.s32.totalorder %v267, 0
        %v296 = vsel %vm295, 1, 0
        %v297 = vcvt.s32.f32 %v296
        %v298 = vld [vmem:[%s247] sm:$0x3]
        %v299 = vmul.f32 %v294, %v297
        %v300 = vadd.f32 %v298, %v299
        %301 = vst [vmem:[%s247] sm:$0x3] %v300
        %v302 = vld [vmem:[%s254] sm:$0x3]
        %v303 = vadd.f32 %v294, %v297
        %v304 = vadd.f32 %v302, %v303
        %305 = vst [vmem:[%s254] sm:$0x3] %v304
        %v306 = vmul.f32 %v283, %v293
        %vm307 = vcmp.eq.s32.totalorder %v267, 1
        %v308 = vsel %vm307, 1, 0
        %v309 = vcvt.s32.f32 %v308
        %s310 = scalar_lea.vmem %s247, 2 [#allocation7]
        %v311 = vld [vmem:[%s310] sm:$0x3]
        %v312 = vmul.f32 %v306, %v309
        %v313 = vadd.f32 %v311, %v312
        %314 = vst [vmem:[%s310] sm:$0x3] %v313
        %s315 = scalar_lea.vmem %s254, 2 [#allocation8]
        %v316 = vld [vmem:[%s315] sm:$0x3]
        %v317 = vadd.f32 %v306, %v309
        %v318 = vadd.f32 %v316, %v317
        %319 = vst [vmem:[%s315] sm:$0x3] %v318
        %v320 = vmul.f32 %v286, %v293
        %vm321 = vcmp.eq.s32.totalorder %v267, 2
        %v322 = vsel %vm321, 1, 0
        %v323 = vcvt.s32.f32 %v322
        %s324 = scalar_lea.vmem %s247, 4 [#allocation7]
        %v325 = vld [vmem:[%s324] sm:$0x3]
        %v326 = vmul.f32 %v320, %v323
        %v327 = vadd.f32 %v325, %v326
        %328 = vst [vmem:[%s324] sm:$0x3] %v327
        %s329 = scalar_lea.vmem %s254, 4 [#allocation8]
        %v330 = vld [vmem:[%s329] sm:$0x3]
        %v331 = vadd.f32 %v320, %v323
        %v332 = vadd.f32 %v330, %v331
        %333 = vst [vmem:[%s329] sm:$0x3] %v332
        %v334 = vmul.f32 %v289, %v293
        %vm335 = vcmp.eq.s32.totalorder %v267, 3
        %v336 = vsel %vm335, 1, 0
        %v337 = vcvt.s32.f32 %v336
        %s338 = scalar_lea.vmem %s247, 6 [#allocation7]
        %v339 = vld [vmem:[%s338] sm:$0x3]
        %v340 = vmul.f32 %v334, %v337
        %v341 = vadd.f32 %v339, %v340
        %342 = vst [vmem:[%s338] sm:$0x3] %v341
        %s343 = scalar_lea.vmem %s254, 6 [#allocation8]
        %v344 = vld [vmem:[%s343] sm:$0x3]
        %v345 = vadd.f32 %v334, %v337
        %v346 = vadd.f32 %v344, %v345
        %347 = vst [vmem:[%s343] sm:$0x3] %v346
        %s348 = sand.u32 %s103, 1
        %s349 = scalar_lea.sflag [#allocation4], %s348
        %s350 = sand.u32 %s103, 1
        %s351 = smul.addr %s350, 8
        %s352 = scalar_lea.vmem [#allocation7], %s351
        %s353 = sand.u32 %s129, 1
        %s354 = scalar_lea.sflag [#allocation9], %s353
        %s355 = sand.u32 %s129, 1
        %s356 = smul.addr %s355, 8
        %s357 = scalar_lea.vmem [#allocation8], %s356
        // Predicated region
        $region41: #{tpu_custom_call.1} parent=27 // pred_check
          %p358 = pneg %p113
        $region42: #{tpu_custom_call.1} parent=27 // pred_check_branch
          %360 = sbr.rel (%p358) target = $region44
        $region43: #{tpu_custom_call.1} parent=27 // pred_region
          %s362 = ssub.s32 128, 128
          %363 = vsyncadd %s349, %s362
          %s364 = smul.addr %s31, 4
          %s365 = smul.addr %s364, 32
          %s366 = scalar_lea.hbm %s2, %s365
          %s367 = sshll.u32 %s352, 4
          %s368 = int_to_ptr.vmem [resolvable:$true] %s367
          %373 = dma.vmem_to_hbm [thread:$0]  %s368, 128, %s366, %s349, 32, 32, 2
        $region44: #{tpu_custom_call.1} parent=27 // pred_fallthru
          _
        // Predicated region
        $region45: #{tpu_custom_call.1} parent=27 // pred_check
          %p374 = pneg %p139
        $region46: #{tpu_custom_call.1} parent=27 // pred_check_branch
          %376 = sbr.rel (%p374) target = $region48
        $region47: #{tpu_custom_call.1} parent=27 // pred_region
          %s378 = ssub.s32 128, 128
          %379 = vsyncadd %s354, %s378
          %s380 = smul.addr %s31, 4
          %s381 = smul.addr %s380, 32
          %s382 = scalar_lea.hbm %s3, %s381
          %s383 = sshll.u32 %s357, 4
          %s384 = int_to_ptr.vmem [resolvable:$true] %s383
          %389 = dma.vmem_to_hbm [thread:$0]  %s384, 128, %s382, %s354, 32, 32, 2
        $region48: #{tpu_custom_call.1} parent=27 // pred_fallthru
          _
      $region28: #{tpu_custom_call.1} parent=5 // pred_fallthru
        _
      %p390 = scmp.le.s32.totalorder 2, %s22
      // Predicated region
      $region49: #{tpu_custom_call.1} parent=5 // pred_check
        %p391 = pneg %p390
      $region50: #{tpu_custom_call.1} parent=5 // pred_check_branch
        %393 = sbr.rel (%p391) target = $region52
      $region51: #{tpu_custom_call.1} parent=5 // pred_region
        %s394 = ssub.s32 %s22, 2
        // Predicated region
        $region53: #{tpu_custom_call.1} parent=51 // pred_check
          %p395 = pneg %p119
        $region54: #{tpu_custom_call.1} parent=51 // pred_check_branch
          %397 = sbr.rel (%p395) target = $region56
        $region55: #{tpu_custom_call.1} parent=51 // pred_region
          %s398 = sand.u32 %s104, 1
          %s399 = scalar_lea.sflag [#allocation4], %s398
          %s400 = sand.u32 %s104, 1
          %s401 = smul.addr %s400, 8
          %s402 = scalar_lea.vmem [#allocation7], %s401
          %403 = dma.done %s399, 128
        $region56: #{tpu_custom_call.1} parent=51 // pred_fallthru
          _
        // Predicated region
        $region57: #{tpu_custom_call.1} parent=51 // pred_check
          %p404 = pneg %p145
        $region58: #{tpu_custom_call.1} parent=51 // pred_check_branch
          %406 = sbr.rel (%p404) target = $region60
        $region59: #{tpu_custom_call.1} parent=51 // pred_region
          %s407 = sand.u32 %s130, 1
          %s408 = scalar_lea.sflag [#allocation9], %s407
          %s409 = sand.u32 %s130, 1
          %s410 = smul.addr %s409, 8
          %s411 = scalar_lea.vmem [#allocation8], %s410
          %412 = dma.done %s408, 128
        $region60: #{tpu_custom_call.1} parent=51 // pred_fallthru
          _
      $region52: #{tpu_custom_call.1} parent=5 // pred_fallthru
        _
    $region6: #{tpu_custom_call.1} parent=1 // loop_footer
      %s26 = sadd.s32 1, %s22
    $region7: #{tpu_custom_call.1} parent=1 // loop_footer_branch
      %21 = sbr.rel target = $region3
    $region8: #{tpu_custom_call.1} parent=1 // loop_exit
      _
    %413 = vsyncpa [#allocation3], 1
    %s414 = scalar_lea.sflag [#allocation3], 1
    %415 = vsyncpa %s414, 1
    %416 = vsyncpa [#allocation6], 1
    %s417 = scalar_lea.sflag [#allocation6], 1
    %418 = vsyncpa %s417, 1
    %419 = vsyncpa [#allocation4], 1
    %s420 = scalar_lea.sflag [#allocation4], 1
    %421 = vsyncpa %s420, 1
    %422 = vsyncpa [#allocation9], 1
    %s423 = scalar_lea.sflag [#allocation9], 1
    %424 = vsyncpa %s423, 1

</llo_original>
